<compile_context>
chip_gen: v5e
topology: v5e:2x2
jax: 0.10.0
libtpu: 0.0.40
codegen_flags: <defaults>
</compile_context>

<pallas_src>
import functools

import jax
import jax.numpy as jnp
from jax import lax
from jax.experimental import pallas as pl
from jax.experimental.pallas import tpu as pltpu

# Stand-ins for constants.Training_Constants.eye_image_constants (not provided).
INPUT_SIZE = 64          # flattened eye-image size
FC_SIZES = (64, 32)      # FC_SIZES
LSTM_HIDDEN = 32         # LTSM_HIDDEN
LSTM_LAYERS = 1          # LTSM_LAYERS  (forward below is written for 1 layer)
BIDIRECTIONAL = True     # BIDIRECTIONAL

_OUT_PAD = 128           # lane-dense padding for the scalar head output


def _vmem():
    return pl.BlockSpec(memory_space=pltpu.MemorySpace.VMEM)


# ---------------------------------------------------------------------------
# Fully fused forward kernel.
# refs = (x, [w_fc, b_fc] * num_fc, w_gx, w_hh, b_g, w_out, b_out, out)
#   x     : (T*B, input)  time-major rows (row = t*B + b)
#   w_gx  : (fc_out, 8H)  packed input->gate projection (both directions)
#   w_hh  : (2H, 8H)      packed block-diagonal recurrent weights
#   b_g   : (1, 8H)       packed (b_ih + b_hh) for both directions
#   w_out : (1, 2H) pre-transposed head weights, b_out: (1, 1)
#   out   : (B, _OUT_PAD) lane-dense scalar output (column 0 is the result)
# ---------------------------------------------------------------------------
def _eyeblink_kernel(*refs, num_fc, batch, time_steps, hidden, bidirectional):
    x_ref = refs[0]
    fc_refs = refs[1:1 + 2 * num_fc]
    w_gx_ref, w_hh_ref, b_g_ref, w_out_ref, b_out_ref, o_ref = refs[1 + 2 * num_fc:]

    # ---- FC stack with ReLU (row-independent, so time-major order is fine) ----
    x = x_ref[...]
    for i in range(num_fc):
        w = fc_refs[2 * i][...]
        b = fc_refs[2 * i + 1][...]
        x = jnp.maximum(jnp.dot(x, w, preferred_element_type=jnp.float32) + b, 0.0)

    ndir = 2 if bidirectional else 1
    hp = ndir * hidden          # packed hidden width      (2H)
    gp = 4 * hp                 # packed gate width        (8H)

    # ---- x-side gate projection for ALL timesteps & directions, bias folded ----
    gates_x = jnp.dot(x, w_gx_ref[...], preferred_element_type=jnp.float32) + b_g_ref[...]
    # gates_x: (T*B, gp), row = t*B + b

    lane = lax.broadcasted_iota(jnp.int32, (batch, gp), 1)
    tanh_lanes = (lane >= 2 * hp) & (lane < 3 * hp)       # the 'g' gate block

    # ---- hoisted fwd/bwd merge: build all T merged gate blocks BEFORE the loop ----
    # (VPU select moved off the latency-bound serial chain into the idle pre-loop
    #  phase; loop body now only does static row slice + MXU + activation + state.)
    gx_blocks = []
    if bidirectional:
        fwd_lanes = (lane % hp) < hidden                  # fwd half of each gate block
        for t in range(time_steps):
            gx_f = gates_x[t * batch:(t + 1) * batch, :]
            tb = time_steps - 1 - t
            gx_b = gates_x[tb * batch:(tb + 1) * batch, :]
            gx_blocks.append(jnp.where(fwd_lanes, gx_f, gx_b))
    else:
        for t in range(time_steps):
            gx_blocks.append(gates_x[t * batch:(t + 1) * batch, :])

    w_hh = w_hh_ref[...]
    h = jnp.zeros((batch, hp), jnp.float32)               # packed [h_fwd | h_bwd]
    c = jnp.zeros((batch, hp), jnp.float32)

    # ---- fully unrolled recurrence (T is small and static) ----
    # TODO(synk): for much larger T switch to lax.fori_loop with modest unroll and
    # a VMEM-scratch gates buffer instead of full Python unroll.
    for t in range(time_steps):
        gates = gx_blocks[t] + jnp.dot(h, w_hh, preferred_element_type=jnp.float32)
        # Single EUP pass over the full (B, 8H) block:
        #   g lanes  -> tanh(x)
        #   i,f,o    -> sigmoid(x) = 0.5 * (1 + tanh(x/2))
        tt = jnp.tanh(jnp.where(tanh_lanes, gates, 0.5 * gates))
        act = jnp.where(tanh_lanes, tt, 0.5 * (tt + 1.0))
        i_g = act[:, 0 * hp:1 * hp]
        f_g = act[:, 1 * hp:2 * hp]
        g_g = act[:, 2 * hp:3 * hp]
        o_g = act[:, 3 * hp:4 * hp]
        c = f_g * c + i_g * g_g
        h = o_g * jnp.tanh(c)

    # h == [h_fwd_final | h_bwd_final]  ==  torch.cat([h[-2], h[-1]], dim=1)
    # Output head as VPU multiply + lane reduction (no 1-lane MXU push).
    y = jnp.sum(h * w_out_ref[...], axis=-1, keepdims=True) + b_out_ref[...]
    o_ref[...] = jnp.broadcast_to(y, (batch, _OUT_PAD)).astype(o_ref.dtype)


# ---------------------------------------------------------------------------
# Parameter construction (deterministic, PyTorch-like per-direction layout)
# ---------------------------------------------------------------------------
def init_params(key):
    params = {"fcs": [], "lstm": None, "out": None}
    in_dim = INPUT_SIZE
    keys = jax.random.split(key, 2 * len(FC_SIZES) + 8)
    ki = 0
    for s in FC_SIZES:
        bound = 1.0 / jnp.sqrt(in_dim)
        w = jax.random.uniform(keys[ki], (in_dim, s), jnp.float32, -bound, bound)
        b = jax.random.uniform(keys[ki + 1], (s,), jnp.float32, -bound, bound)
        params["fcs"].append((w, b))
        ki += 2
        in_dim = s

    hid = LSTM_HIDDEN
    bound = 1.0 / jnp.sqrt(hid)

    def lstm_dir_params(k0, k1, k2, d_in):
        w_ih = jax.random.uniform(keys[k0], (d_in, 4 * hid), jnp.float32, -bound, bound)
        w_hh = jax.random.uniform(keys[k1], (hid, 4 * hid), jnp.float32, -bound, bound)
        # b_ih + b_hh folded into a single bias vector (forward math identical).
        b = jax.random.uniform(keys[k2], (4 * hid,), jnp.float32, -2 * bound, 2 * bound)
        return w_ih, w_hh, b

    fwd = lstm_dir_params(ki, ki + 1, ki + 2, in_dim)
    bwd = lstm_dir_params(ki + 3, ki + 4, ki + 5, in_dim)
    params["lstm"] = (fwd, bwd)
    ki += 6

    out_dim = hid * (2 if BIDIRECTIONAL else 1)
    bound = 1.0 / jnp.sqrt(out_dim)
    w_out = jax.random.uniform(keys[ki], (out_dim, 1), jnp.float32, -bound, bound)
    b_out = jax.random.uniform(keys[ki + 1], (1,), jnp.float32, -bound, bound)
    params["out"] = (w_out, b_out)
    return params


def pack_params(params):
    """One-time repack into the fused kernel's gate-major packed layouts."""
    hid = LSTM_HIDDEN
    fcs = [(w, b.reshape(1, -1)) for w, b in params["fcs"]]

    if BIDIRECTIONAL:
        (w_ih_f, w_hh_f, b_f), (w_ih_b, w_hh_b, b_b) = params["lstm"]
        zeros = jnp.zeros((hid, hid), jnp.float32)
        bx, bh, bb = [], [], []
        for k in range(4):                       # PyTorch gate order i, f, g, o
            sl = slice(k * hid, (k + 1) * hid)
            bx.append(jnp.concatenate([w_ih_f[:, sl], w_ih_b[:, sl]], axis=1))
            top = jnp.concatenate([w_hh_f[:, sl], zeros], axis=1)
            bot = jnp.concatenate([zeros, w_hh_b[:, sl]], axis=1)
            bh.append(jnp.concatenate([top, bot], axis=0))
            bb.append(jnp.concatenate([b_f[sl], b_b[sl]]))
        w_gx = jnp.concatenate(bx, axis=1)       # (fc_out, 8H)
        w_hh = jnp.concatenate(bh, axis=1)       # (2H, 8H), per-gate block-diagonal
        b_g = jnp.concatenate(bb).reshape(1, -1)
    else:
        w_ih_f, w_hh_f, b_f = params["lstm"][0]
        w_gx, w_hh, b_g = w_ih_f, w_hh_f, b_f.reshape(1, -1)

    w_out, b_out = params["out"]
    return {"fcs": fcs, "w_gx": w_gx, "w_hh": w_hh, "b_g": b_g,
            "w_out": w_out.T,                    # (1, 2H) row for the VPU head
            "b_out": b_out.reshape(1, 1)}


# ---------------------------------------------------------------------------
# Full forward pass: one pallas_call, no grid.
# Note (perf): for best throughput pack independent sequences up to B=8 (or a
# multiple of 8) per call — the per-call cost is essentially flat up to 8 rows
# since the hardware tile is (8, 128) sublanes x lanes.
# ---------------------------------------------------------------------------
def eyeblink_forward(packed, img_seq):
    """img_seq: (batch, time_steps, input_size) float32 -> (batch,) float32."""
    batch, time_steps, input_size = img_seq.shape

    # Time-major flattening (row = t*B + b) so the recurrence uses contiguous
    # static row slices in-kernel. This is the only op outside the fused kernel
    # on the activation path (a 4 KB transpose folded into the input feed).
    x_tm = jnp.transpose(img_seq, (1, 0, 2)).reshape(time_steps * batch, input_size)

    fc_args = [a for wb in packed["fcs"] for a in wb]
    inputs = [x_tm, *fc_args, packed["w_gx"], packed["w_hh"], packed["b_g"],
              packed["w_out"], packed["b_out"]]

    # TODO(synk): forward written for LSTM_LAYERS == 1 (stacked layers would loop
    # the packed recurrence with the concatenated per-timestep outputs as input).
    kernel = functools.partial(
        _eyeblink_kernel,
        num_fc=len(packed["fcs"]),
        batch=batch,
        time_steps=time_steps,
        hidden=LSTM_HIDDEN,
        bidirectional=BIDIRECTIONAL,
    )

    y = pl.pallas_call(
        kernel,
        out_shape=jax.ShapeDtypeStruct((batch, _OUT_PAD), jnp.float32),
        in_specs=[_vmem()] * len(inputs),
        out_specs=_vmem(),
    )(*inputs)
    return y[:, 0]                               # squeeze(1)


# ---------------------------------------------------------------------------
# Pure-JAX reference (mirrors the PyTorch forward) for a correctness check.
# ---------------------------------------------------------------------------
def reference_forward(params, img_seq):
    batch, T, _ = img_seq.shape
    hp = jax.lax.Precision.HIGHEST
    x = img_seq.reshape(batch * T, -1)
    for w, b in params["fcs"]:
        x = jnp.maximum(jnp.dot(x, w, precision=hp) + b, 0.0)
    x = x.reshape(batch, T, -1)
    hid = LSTM_HIDDEN

    def run_dir(seq, w_ih, w_hh, b):
        h = jnp.zeros((batch, hid), jnp.float32)
        c = jnp.zeros((batch, hid), jnp.float32)
        for t in range(seq.shape[1]):
            g = jnp.dot(seq[:, t, :], w_ih, precision=hp) + jnp.dot(h, w_hh, precision=hp) + b
            i_g = jax.nn.sigmoid(g[:, 0 * hid:1 * hid])
            f_g = jax.nn.sigmoid(g[:, 1 * hid:2 * hid])
            g_g = jnp.tanh(g[:, 2 * hid:3 * hid])
            o_g = jax.nn.sigmoid(g[:, 3 * hid:4 * hid])
            c = f_g * c + i_g * g_g
            h = o_g * jnp.tanh(c)
        return h

    (w_ih_f, w_hh_f, b_f), (w_ih_b, w_hh_b, b_b) = params["lstm"]
    h_f = run_dir(x, w_ih_f, w_hh_f, b_f)
    h_b = run_dir(x[:, ::-1, :], w_ih_b, w_hh_b, b_b)
    h = jnp.concatenate([h_f, h_b], axis=1) if BIDIRECTIONAL else h_f
    w_out, b_out = params["out"]
    return (jnp.dot(h, w_out, precision=hp) + b_out)[:, 0]


if __name__ == "__main__":
    key = jax.random.PRNGKey(0)
    pkey, xkey = jax.random.split(key)

    params = init_params(pkey)
    packed = pack_params(params)

    batch, time_steps = 2, 8
    img_seq = jax.random.normal(xkey, (batch, time_steps, INPUT_SIZE), jnp.float32)

    out = eyeblink_forward(packed, img_seq)
    out = jax.block_until_ready(out)
    assert out.shape == (batch,), out.shape

    ref = jax.block_until_ready(reference_forward(params, img_seq))
    assert jnp.allclose(out, ref, atol=2e-3, rtol=2e-3), (out, ref)

    print("KERNEL_OK")
</pallas_src>

<mosaic_0001>
module attributes {stable_mosaic.version = 11 : i64} {
  func.func @_eyeblink_kernel(%arg0: memref<16x64xf32, #tpu.memory_space<vmem>>, %arg1: memref<64x64xf32, #tpu.memory_space<vmem>>, %arg2: memref<1x64xf32, #tpu.memory_space<vmem>>, %arg3: memref<64x32xf32, #tpu.memory_space<vmem>>, %arg4: memref<1x32xf32, #tpu.memory_space<vmem>>, %arg5: memref<32x256xf32, #tpu.memory_space<vmem>>, %arg6: memref<64x256xf32, #tpu.memory_space<vmem>>, %arg7: memref<1x256xf32, #tpu.memory_space<vmem>>, %arg8: memref<1x64xf32, #tpu.memory_space<vmem>>, %arg9: memref<1x1xf32, #tpu.memory_space<vmem>>, %arg10: memref<2x128xf32, #tpu.memory_space<vmem>>) attributes {dimension_semantics = [], scalar_prefetch = 0 : i64, scratch_operands = 0 : i64, tpu.core_type = #tpu.core_type<tc>} {
    %c0 = arith.constant 0 : index
    %c0_0 = arith.constant 0 : index
    %0 = vector.load %arg0[%c0, %c0_0] : memref<16x64xf32, #tpu.memory_space<vmem>>, vector<16x64xf32>
    %c0_1 = arith.constant 0 : index
    %c0_2 = arith.constant 0 : index
    %1 = vector.load %arg1[%c0_1, %c0_2] : memref<64x64xf32, #tpu.memory_space<vmem>>, vector<64x64xf32>
    %c0_3 = arith.constant 0 : index
    %c0_4 = arith.constant 0 : index
    %2 = vector.load %arg2[%c0_3, %c0_4] : memref<1x64xf32, #tpu.memory_space<vmem>>, vector<1x64xf32>
    %cst = arith.constant dense<0.000000e+00> : vector<16x64xf32>
    %3 = tpu.matmul %0, %1, %cst {dimension_numbers = #tpu.dot_dimension_numbers<[1], [0], [0], [1], [0, 0, 1, 1], [], []>} : vector<16x64xf32>, vector<64x64xf32>, vector<16x64xf32> -> vector<16x64xf32>
    %4 = vector.broadcast %2 : vector<1x64xf32> to vector<16x64xf32>
    %5 = arith.addf %3, %4 : vector<16x64xf32>
    %cst_5 = arith.constant 0.000000e+00 : f32
    %6 = vector.broadcast %cst_5 : f32 to vector<16x64xf32>
    %7 = arith.maximumf %5, %6 : vector<16x64xf32>
    %c0_6 = arith.constant 0 : index
    %c0_7 = arith.constant 0 : index
    %8 = vector.load %arg3[%c0_6, %c0_7] : memref<64x32xf32, #tpu.memory_space<vmem>>, vector<64x32xf32>
    %c0_8 = arith.constant 0 : index
    %c0_9 = arith.constant 0 : index
    %9 = vector.load %arg4[%c0_8, %c0_9] : memref<1x32xf32, #tpu.memory_space<vmem>>, vector<1x32xf32>
    %cst_10 = arith.constant dense<0.000000e+00> : vector<16x32xf32>
    %10 = tpu.matmul %7, %8, %cst_10 {dimension_numbers = #tpu.dot_dimension_numbers<[1], [0], [0], [1], [0, 0, 1, 1], [], []>} : vector<16x64xf32>, vector<64x32xf32>, vector<16x32xf32> -> vector<16x32xf32>
    %11 = vector.broadcast %9 : vector<1x32xf32> to vector<16x32xf32>
    %12 = arith.addf %10, %11 : vector<16x32xf32>
    %cst_11 = arith.constant 0.000000e+00 : f32
    %13 = vector.broadcast %cst_11 : f32 to vector<16x32xf32>
    %14 = arith.maximumf %12, %13 : vector<16x32xf32>
    %c0_12 = arith.constant 0 : index
    %c0_13 = arith.constant 0 : index
    %15 = vector.load %arg5[%c0_12, %c0_13] : memref<32x256xf32, #tpu.memory_space<vmem>>, vector<32x256xf32>
    %cst_14 = arith.constant dense<0.000000e+00> : vector<16x256xf32>
    %16 = tpu.matmul %14, %15, %cst_14 {dimension_numbers = #tpu.dot_dimension_numbers<[1], [0], [0], [1], [0, 0, 1, 1], [], []>} : vector<16x32xf32>, vector<32x256xf32>, vector<16x256xf32> -> vector<16x256xf32>
    %c0_15 = arith.constant 0 : index
    %c0_16 = arith.constant 0 : index
    %17 = vector.load %arg7[%c0_15, %c0_16] : memref<1x256xf32, #tpu.memory_space<vmem>>, vector<1x256xf32>
    %18 = vector.broadcast %17 : vector<1x256xf32> to vector<16x256xf32>
    %19 = arith.addf %16, %18 : vector<16x256xf32>
    %20 = tpu.iota {dimensions = array<i32: 1>} : vector<2x256xi32>
    %c128_i32 = arith.constant 128 : i32
    %21 = vector.broadcast %c128_i32 : i32 to vector<2x256xi32>
    %22 = arith.cmpi sge, %20, %21 : vector<2x256xi32>
    %c192_i32 = arith.constant 192 : i32
    %23 = vector.broadcast %c192_i32 : i32 to vector<2x256xi32>
    %24 = arith.cmpi slt, %20, %23 : vector<2x256xi32>
    %25 = arith.andi %22, %24 : vector<2x256xi1>
    %c64_i32 = arith.constant 64 : i32
    %c0_i32 = arith.constant 0 : i32
    %26 = arith.cmpi eq, %c64_i32, %c0_i32 : i32
    %c1_i32 = arith.constant 1 : i32
    %27 = arith.select %26, %c1_i32, %c64_i32 : i32
    %28 = vector.broadcast %27 : i32 to vector<2x256xi32>
    %29 = arith.remsi %20, %28 : vector<2x256xi32>
    %c0_i32_17 = arith.constant 0 : i32
    %30 = vector.broadcast %c0_i32_17 : i32 to vector<2x256xi32>
    %31 = arith.cmpi ne, %29, %30 : vector<2x256xi32>
    %c0_i32_18 = arith.constant 0 : i32
    %32 = vector.broadcast %c0_i32_18 : i32 to vector<2x256xi32>
    %33 = arith.cmpi slt, %29, %32 : vector<2x256xi32>
    %c0_i32_19 = arith.constant 0 : i32
    %34 = arith.cmpi slt, %27, %c0_i32_19 : i32
    %35 = vector.broadcast %34 : i1 to vector<2x256xi1>
    %36 = vector.broadcast %35 : vector<2x256xi1> to vector<2x256xi1>
    %37 = arith.xori %33, %36 : vector<2x256xi1>
    %38 = arith.andi %37, %31 : vector<2x256xi1>
    %39 = vector.broadcast %27 : i32 to vector<2x256xi32>
    %40 = arith.addi %29, %39 : vector<2x256xi32>
    %41 = arith.select %38, %40, %29 : vector<2x256xi1>, vector<2x256xi32>
    %c32_i32 = arith.constant 32 : i32
    %42 = vector.broadcast %c32_i32 : i32 to vector<2x256xi32>
    %43 = arith.cmpi slt, %41, %42 : vector<2x256xi32>
    %44 = vector.extract_strided_slice %19 {offsets = [0, 0], sizes = [2, 256], strides = [1, 1]} : vector<16x256xf32> to vector<2x256xf32>
    %45 = vector.extract_strided_slice %19 {offsets = [14, 0], sizes = [2, 256], strides = [1, 1]} : vector<16x256xf32> to vector<2x256xf32>
    %46 = arith.select %43, %44, %45 : vector<2x256xi1>, vector<2x256xf32>
    %47 = vector.extract_strided_slice %19 {offsets = [2, 0], sizes = [2, 256], strides = [1, 1]} : vector<16x256xf32> to vector<2x256xf32>
    %48 = vector.extract_strided_slice %19 {offsets = [12, 0], sizes = [2, 256], strides = [1, 1]} : vector<16x256xf32> to vector<2x256xf32>
    %49 = arith.select %43, %47, %48 : vector<2x256xi1>, vector<2x256xf32>
    %50 = vector.extract_strided_slice %19 {offsets = [4, 0], sizes = [2, 256], strides = [1, 1]} : vector<16x256xf32> to vector<2x256xf32>
    %51 = vector.extract_strided_slice %19 {offsets = [10, 0], sizes = [2, 256], strides = [1, 1]} : vector<16x256xf32> to vector<2x256xf32>
    %52 = arith.select %43, %50, %51 : vector<2x256xi1>, vector<2x256xf32>
    %53 = vector.extract_strided_slice %19 {offsets = [6, 0], sizes = [2, 256], strides = [1, 1]} : vector<16x256xf32> to vector<2x256xf32>
    %54 = vector.extract_strided_slice %19 {offsets = [8, 0], sizes = [2, 256], strides = [1, 1]} : vector<16x256xf32> to vector<2x256xf32>
    %55 = arith.select %43, %53, %54 : vector<2x256xi1>, vector<2x256xf32>
    %56 = vector.extract_strided_slice %19 {offsets = [8, 0], sizes = [2, 256], strides = [1, 1]} : vector<16x256xf32> to vector<2x256xf32>
    %57 = vector.extract_strided_slice %19 {offsets = [6, 0], sizes = [2, 256], strides = [1, 1]} : vector<16x256xf32> to vector<2x256xf32>
    %58 = arith.select %43, %56, %57 : vector<2x256xi1>, vector<2x256xf32>
    %59 = vector.extract_strided_slice %19 {offsets = [10, 0], sizes = [2, 256], strides = [1, 1]} : vector<16x256xf32> to vector<2x256xf32>
    %60 = vector.extract_strided_slice %19 {offsets = [4, 0], sizes = [2, 256], strides = [1, 1]} : vector<16x256xf32> to vector<2x256xf32>
    %61 = arith.select %43, %59, %60 : vector<2x256xi1>, vector<2x256xf32>
    %62 = vector.extract_strided_slice %19 {offsets = [12, 0], sizes = [2, 256], strides = [1, 1]} : vector<16x256xf32> to vector<2x256xf32>
    %63 = vector.extract_strided_slice %19 {offsets = [2, 0], sizes = [2, 256], strides = [1, 1]} : vector<16x256xf32> to vector<2x256xf32>
    %64 = arith.select %43, %62, %63 : vector<2x256xi1>, vector<2x256xf32>
    %65 = vector.extract_strided_slice %19 {offsets = [14, 0], sizes = [2, 256], strides = [1, 1]} : vector<16x256xf32> to vector<2x256xf32>
    %66 = vector.extract_strided_slice %19 {offsets = [0, 0], sizes = [2, 256], strides = [1, 1]} : vector<16x256xf32> to vector<2x256xf32>
    %67 = arith.select %43, %65, %66 : vector<2x256xi1>, vector<2x256xf32>
    %c0_20 = arith.constant 0 : index
    %c0_21 = arith.constant 0 : index
    %68 = vector.load %arg6[%c0_20, %c0_21] : memref<64x256xf32, #tpu.memory_space<vmem>>, vector<64x256xf32>
    %cst_22 = arith.constant 0.000000e+00 : f32
    %69 = vector.broadcast %cst_22 : f32 to vector<2x64xf32>
    %cst_23 = arith.constant 0.000000e+00 : f32
    %70 = vector.broadcast %cst_23 : f32 to vector<2x64xf32>
    %cst_24 = arith.constant dense<0.000000e+00> : vector<2x256xf32>
    %71 = tpu.matmul %69, %68, %cst_24 {dimension_numbers = #tpu.dot_dimension_numbers<[1], [0], [0], [1], [0, 0, 1, 1], [], []>} : vector<2x64xf32>, vector<64x256xf32>, vector<2x256xf32> -> vector<2x256xf32>
    %72 = arith.addf %46, %71 : vector<2x256xf32>
    %cst_25 = arith.constant 5.000000e-01 : f32
    %73 = vector.broadcast %cst_25 : f32 to vector<2x256xf32>
    %74 = arith.mulf %73, %72 : vector<2x256xf32>
    %75 = arith.select %25, %72, %74 : vector<2x256xi1>, vector<2x256xf32>
    %76 = math.tanh %75 : vector<2x256xf32>
    %cst_26 = arith.constant 1.000000e+00 : f32
    %77 = vector.broadcast %cst_26 : f32 to vector<2x256xf32>
    %78 = arith.addf %76, %77 : vector<2x256xf32>
    %cst_27 = arith.constant 5.000000e-01 : f32
    %79 = vector.broadcast %cst_27 : f32 to vector<2x256xf32>
    %80 = arith.mulf %79, %78 : vector<2x256xf32>
    %81 = arith.select %25, %76, %80 : vector<2x256xi1>, vector<2x256xf32>
    %82 = vector.extract_strided_slice %81 {offsets = [0, 0], sizes = [2, 64], strides = [1, 1]} : vector<2x256xf32> to vector<2x64xf32>
    %83 = vector.extract_strided_slice %81 {offsets = [0, 64], sizes = [2, 64], strides = [1, 1]} : vector<2x256xf32> to vector<2x64xf32>
    %84 = vector.extract_strided_slice %81 {offsets = [0, 128], sizes = [2, 64], strides = [1, 1]} : vector<2x256xf32> to vector<2x64xf32>
    %85 = vector.extract_strided_slice %81 {offsets = [0, 192], sizes = [2, 64], strides = [1, 1]} : vector<2x256xf32> to vector<2x64xf32>
    %86 = arith.mulf %83, %70 : vector<2x64xf32>
    %87 = arith.mulf %82, %84 : vector<2x64xf32>
    %88 = arith.addf %86, %87 : vector<2x64xf32>
    %89 = math.tanh %88 : vector<2x64xf32>
    %90 = arith.mulf %85, %89 : vector<2x64xf32>
    %cst_28 = arith.constant dense<0.000000e+00> : vector<2x256xf32>
    %91 = tpu.matmul %90, %68, %cst_28 {dimension_numbers = #tpu.dot_dimension_numbers<[1], [0], [0], [1], [0, 0, 1, 1], [], []>} : vector<2x64xf32>, vector<64x256xf32>, vector<2x256xf32> -> vector<2x256xf32>
    %92 = arith.addf %49, %91 : vector<2x256xf32>
    %cst_29 = arith.constant 5.000000e-01 : f32
    %93 = vector.broadcast %cst_29 : f32 to vector<2x256xf32>
    %94 = arith.mulf %93, %92 : vector<2x256xf32>
    %95 = arith.select %25, %92, %94 : vector<2x256xi1>, vector<2x256xf32>
    %96 = math.tanh %95 : vector<2x256xf32>
    %cst_30 = arith.constant 1.000000e+00 : f32
    %97 = vector.broadcast %cst_30 : f32 to vector<2x256xf32>
    %98 = arith.addf %96, %97 : vector<2x256xf32>
    %cst_31 = arith.constant 5.000000e-01 : f32
    %99 = vector.broadcast %cst_31 : f32 to vector<2x256xf32>
    %100 = arith.mulf %99, %98 : vector<2x256xf32>
    %101 = arith.select %25, %96, %100 : vector<2x256xi1>, vector<2x256xf32>
    %102 = vector.extract_strided_slice %101 {offsets = [0, 0], sizes = [2, 64], strides = [1, 1]} : vector<2x256xf32> to vector<2x64xf32>
    %103 = vector.extract_strided_slice %101 {offsets = [0, 64], sizes = [2, 64], strides = [1, 1]} : vector<2x256xf32> to vector<2x64xf32>
    %104 = vector.extract_strided_slice %101 {offsets = [0, 128], sizes = [2, 64], strides = [1, 1]} : vector<2x256xf32> to vector<2x64xf32>
    %105 = vector.extract_strided_slice %101 {offsets = [0, 192], sizes = [2, 64], strides = [1, 1]} : vector<2x256xf32> to vector<2x64xf32>
    %106 = arith.mulf %103, %88 : vector<2x64xf32>
    %107 = arith.mulf %102, %104 : vector<2x64xf32>
    %108 = arith.addf %106, %107 : vector<2x64xf32>
    %109 = math.tanh %108 : vector<2x64xf32>
    %110 = arith.mulf %105, %109 : vector<2x64xf32>
    %cst_32 = arith.constant dense<0.000000e+00> : vector<2x256xf32>
    %111 = tpu.matmul %110, %68, %cst_32 {dimension_numbers = #tpu.dot_dimension_numbers<[1], [0], [0], [1], [0, 0, 1, 1], [], []>} : vector<2x64xf32>, vector<64x256xf32>, vector<2x256xf32> -> vector<2x256xf32>
    %112 = arith.addf %52, %111 : vector<2x256xf32>
    %cst_33 = arith.constant 5.000000e-01 : f32
    %113 = vector.broadcast %cst_33 : f32 to vector<2x256xf32>
    %114 = arith.mulf %113, %112 : vector<2x256xf32>
    %115 = arith.select %25, %112, %114 : vector<2x256xi1>, vector<2x256xf32>
    %116 = math.tanh %115 : vector<2x256xf32>
    %cst_34 = arith.constant 1.000000e+00 : f32
    %117 = vector.broadcast %cst_34 : f32 to vector<2x256xf32>
    %118 = arith.addf %116, %117 : vector<2x256xf32>
    %cst_35 = arith.constant 5.000000e-01 : f32
    %119 = vector.broadcast %cst_35 : f32 to vector<2x256xf32>
    %120 = arith.mulf %119, %118 : vector<2x256xf32>
    %121 = arith.select %25, %116, %120 : vector<2x256xi1>, vector<2x256xf32>
    %122 = vector.extract_strided_slice %121 {offsets = [0, 0], sizes = [2, 64], strides = [1, 1]} : vector<2x256xf32> to vector<2x64xf32>
    %123 = vector.extract_strided_slice %121 {offsets = [0, 64], sizes = [2, 64], strides = [1, 1]} : vector<2x256xf32> to vector<2x64xf32>
    %124 = vector.extract_strided_slice %121 {offsets = [0, 128], sizes = [2, 64], strides = [1, 1]} : vector<2x256xf32> to vector<2x64xf32>
    %125 = vector.extract_strided_slice %121 {offsets = [0, 192], sizes = [2, 64], strides = [1, 1]} : vector<2x256xf32> to vector<2x64xf32>
    %126 = arith.mulf %123, %108 : vector<2x64xf32>
    %127 = arith.mulf %122, %124 : vector<2x64xf32>
    %128 = arith.addf %126, %127 : vector<2x64xf32>
    %129 = math.tanh %128 : vector<2x64xf32>
    %130 = arith.mulf %125, %129 : vector<2x64xf32>
    %cst_36 = arith.constant dense<0.000000e+00> : vector<2x256xf32>
    %131 = tpu.matmul %130, %68, %cst_36 {dimension_numbers = #tpu.dot_dimension_numbers<[1], [0], [0], [1], [0, 0, 1, 1], [], []>} : vector<2x64xf32>, vector<64x256xf32>, vector<2x256xf32> -> vector<2x256xf32>
    %132 = arith.addf %55, %131 : vector<2x256xf32>
    %cst_37 = arith.constant 5.000000e-01 : f32
    %133 = vector.broadcast %cst_37 : f32 to vector<2x256xf32>
    %134 = arith.mulf %133, %132 : vector<2x256xf32>
    %135 = arith.select %25, %132, %134 : vector<2x256xi1>, vector<2x256xf32>
    %136 = math.tanh %135 : vector<2x256xf32>
    %cst_38 = arith.constant 1.000000e+00 : f32
    %137 = vector.broadcast %cst_38 : f32 to vector<2x256xf32>
    %138 = arith.addf %136, %137 : vector<2x256xf32>
    %cst_39 = arith.constant 5.000000e-01 : f32
    %139 = vector.broadcast %cst_39 : f32 to vector<2x256xf32>
    %140 = arith.mulf %139, %138 : vector<2x256xf32>
    %141 = arith.select %25, %136, %140 : vector<2x256xi1>, vector<2x256xf32>
    %142 = vector.extract_strided_slice %141 {offsets = [0, 0], sizes = [2, 64], strides = [1, 1]} : vector<2x256xf32> to vector<2x64xf32>
    %143 = vector.extract_strided_slice %141 {offsets = [0, 64], sizes = [2, 64], strides = [1, 1]} : vector<2x256xf32> to vector<2x64xf32>
    %144 = vector.extract_strided_slice %141 {offsets = [0, 128], sizes = [2, 64], strides = [1, 1]} : vector<2x256xf32> to vector<2x64xf32>
    %145 = vector.extract_strided_slice %141 {offsets = [0, 192], sizes = [2, 64], strides = [1, 1]} : vector<2x256xf32> to vector<2x64xf32>
    %146 = arith.mulf %143, %128 : vector<2x64xf32>
    %147 = arith.mulf %142, %144 : vector<2x64xf32>
    %148 = arith.addf %146, %147 : vector<2x64xf32>
    %149 = math.tanh %148 : vector<2x64xf32>
    %150 = arith.mulf %145, %149 : vector<2x64xf32>
    %cst_40 = arith.constant dense<0.000000e+00> : vector<2x256xf32>
    %151 = tpu.matmul %150, %68, %cst_40 {dimension_numbers = #tpu.dot_dimension_numbers<[1], [0], [0], [1], [0, 0, 1, 1], [], []>} : vector<2x64xf32>, vector<64x256xf32>, vector<2x256xf32> -> vector<2x256xf32>
    %152 = arith.addf %58, %151 : vector<2x256xf32>
    %cst_41 = arith.constant 5.000000e-01 : f32
    %153 = vector.broadcast %cst_41 : f32 to vector<2x256xf32>
    %154 = arith.mulf %153, %152 : vector<2x256xf32>
    %155 = arith.select %25, %152, %154 : vector<2x256xi1>, vector<2x256xf32>
    %156 = math.tanh %155 : vector<2x256xf32>
    %cst_42 = arith.constant 1.000000e+00 : f32
    %157 = vector.broadcast %cst_42 : f32 to vector<2x256xf32>
    %158 = arith.addf %156, %157 : vector<2x256xf32>
    %cst_43 = arith.constant 5.000000e-01 : f32
    %159 = vector.broadcast %cst_43 : f32 to vector<2x256xf32>
    %160 = arith.mulf %159, %158 : vector<2x256xf32>
    %161 = arith.select %25, %156, %160 : vector<2x256xi1>, vector<2x256xf32>
    %162 = vector.extract_strided_slice %161 {offsets = [0, 0], sizes = [2, 64], strides = [1, 1]} : vector<2x256xf32> to vector<2x64xf32>
    %163 = vector.extract_strided_slice %161 {offsets = [0, 64], sizes = [2, 64], strides = [1, 1]} : vector<2x256xf32> to vector<2x64xf32>
    %164 = vector.extract_strided_slice %161 {offsets = [0, 128], sizes = [2, 64], strides = [1, 1]} : vector<2x256xf32> to vector<2x64xf32>
    %165 = vector.extract_strided_slice %161 {offsets = [0, 192], sizes = [2, 64], strides = [1, 1]} : vector<2x256xf32> to vector<2x64xf32>
    %166 = arith.mulf %163, %148 : vector<2x64xf32>
    %167 = arith.mulf %162, %164 : vector<2x64xf32>
    %168 = arith.addf %166, %167 : vector<2x64xf32>
    %169 = math.tanh %168 : vector<2x64xf32>
    %170 = arith.mulf %165, %169 : vector<2x64xf32>
    %cst_44 = arith.constant dense<0.000000e+00> : vector<2x256xf32>
    %171 = tpu.matmul %170, %68, %cst_44 {dimension_numbers = #tpu.dot_dimension_numbers<[1], [0], [0], [1], [0, 0, 1, 1], [], []>} : vector<2x64xf32>, vector<64x256xf32>, vector<2x256xf32> -> vector<2x256xf32>
    %172 = arith.addf %61, %171 : vector<2x256xf32>
    %cst_45 = arith.constant 5.000000e-01 : f32
    %173 = vector.broadcast %cst_45 : f32 to vector<2x256xf32>
    %174 = arith.mulf %173, %172 : vector<2x256xf32>
    %175 = arith.select %25, %172, %174 : vector<2x256xi1>, vector<2x256xf32>
    %176 = math.tanh %175 : vector<2x256xf32>
    %cst_46 = arith.constant 1.000000e+00 : f32
    %177 = vector.broadcast %cst_46 : f32 to vector<2x256xf32>
    %178 = arith.addf %176, %177 : vector<2x256xf32>
    %cst_47 = arith.constant 5.000000e-01 : f32
    %179 = vector.broadcast %cst_47 : f32 to vector<2x256xf32>
    %180 = arith.mulf %179, %178 : vector<2x256xf32>
    %181 = arith.select %25, %176, %180 : vector<2x256xi1>, vector<2x256xf32>
    %182 = vector.extract_strided_slice %181 {offsets = [0, 0], sizes = [2, 64], strides = [1, 1]} : vector<2x256xf32> to vector<2x64xf32>
    %183 = vector.extract_strided_slice %181 {offsets = [0, 64], sizes = [2, 64], strides = [1, 1]} : vector<2x256xf32> to vector<2x64xf32>
    %184 = vector.extract_strided_slice %181 {offsets = [0, 128], sizes = [2, 64], strides = [1, 1]} : vector<2x256xf32> to vector<2x64xf32>
    %185 = vector.extract_strided_slice %181 {offsets = [0, 192], sizes = [2, 64], strides = [1, 1]} : vector<2x256xf32> to vector<2x64xf32>
    %186 = arith.mulf %183, %168 : vector<2x64xf32>
    %187 = arith.mulf %182, %184 : vector<2x64xf32>
    %188 = arith.addf %186, %187 : vector<2x64xf32>
    %189 = math.tanh %188 : vector<2x64xf32>
    %190 = arith.mulf %185, %189 : vector<2x64xf32>
    %cst_48 = arith.constant dense<0.000000e+00> : vector<2x256xf32>
    %191 = tpu.matmul %190, %68, %cst_48 {dimension_numbers = #tpu.dot_dimension_numbers<[1], [0], [0], [1], [0, 0, 1, 1], [], []>} : vector<2x64xf32>, vector<64x256xf32>, vector<2x256xf32> -> vector<2x256xf32>
    %192 = arith.addf %64, %191 : vector<2x256xf32>
    %cst_49 = arith.constant 5.000000e-01 : f32
    %193 = vector.broadcast %cst_49 : f32 to vector<2x256xf32>
    %194 = arith.mulf %193, %192 : vector<2x256xf32>
    %195 = arith.select %25, %192, %194 : vector<2x256xi1>, vector<2x256xf32>
    %196 = math.tanh %195 : vector<2x256xf32>
    %cst_50 = arith.constant 1.000000e+00 : f32
    %197 = vector.broadcast %cst_50 : f32 to vector<2x256xf32>
    %198 = arith.addf %196, %197 : vector<2x256xf32>
    %cst_51 = arith.constant 5.000000e-01 : f32
    %199 = vector.broadcast %cst_51 : f32 to vector<2x256xf32>
    %200 = arith.mulf %199, %198 : vector<2x256xf32>
    %201 = arith.select %25, %196, %200 : vector<2x256xi1>, vector<2x256xf32>
    %202 = vector.extract_strided_slice %201 {offsets = [0, 0], sizes = [2, 64], strides = [1, 1]} : vector<2x256xf32> to vector<2x64xf32>
    %203 = vector.extract_strided_slice %201 {offsets = [0, 64], sizes = [2, 64], strides = [1, 1]} : vector<2x256xf32> to vector<2x64xf32>
    %204 = vector.extract_strided_slice %201 {offsets = [0, 128], sizes = [2, 64], strides = [1, 1]} : vector<2x256xf32> to vector<2x64xf32>
    %205 = vector.extract_strided_slice %201 {offsets = [0, 192], sizes = [2, 64], strides = [1, 1]} : vector<2x256xf32> to vector<2x64xf32>
    %206 = arith.mulf %203, %188 : vector<2x64xf32>
    %207 = arith.mulf %202, %204 : vector<2x64xf32>
    %208 = arith.addf %206, %207 : vector<2x64xf32>
    %209 = math.tanh %208 : vector<2x64xf32>
    %210 = arith.mulf %205, %209 : vector<2x64xf32>
    %cst_52 = arith.constant dense<0.000000e+00> : vector<2x256xf32>
    %211 = tpu.matmul %210, %68, %cst_52 {dimension_numbers = #tpu.dot_dimension_numbers<[1], [0], [0], [1], [0, 0, 1, 1], [], []>} : vector<2x64xf32>, vector<64x256xf32>, vector<2x256xf32> -> vector<2x256xf32>
    %212 = arith.addf %67, %211 : vector<2x256xf32>
    %cst_53 = arith.constant 5.000000e-01 : f32
    %213 = vector.broadcast %cst_53 : f32 to vector<2x256xf32>
    %214 = arith.mulf %213, %212 : vector<2x256xf32>
    %215 = arith.select %25, %212, %214 : vector<2x256xi1>, vector<2x256xf32>
    %216 = math.tanh %215 : vector<2x256xf32>
    %cst_54 = arith.constant 1.000000e+00 : f32
    %217 = vector.broadcast %cst_54 : f32 to vector<2x256xf32>
    %218 = arith.addf %216, %217 : vector<2x256xf32>
    %cst_55 = arith.constant 5.000000e-01 : f32
    %219 = vector.broadcast %cst_55 : f32 to vector<2x256xf32>
    %220 = arith.mulf %219, %218 : vector<2x256xf32>
    %221 = arith.select %25, %216, %220 : vector<2x256xi1>, vector<2x256xf32>
    %222 = vector.extract_strided_slice %221 {offsets = [0, 0], sizes = [2, 64], strides = [1, 1]} : vector<2x256xf32> to vector<2x64xf32>
    %223 = vector.extract_strided_slice %221 {offsets = [0, 64], sizes = [2, 64], strides = [1, 1]} : vector<2x256xf32> to vector<2x64xf32>
    %224 = vector.extract_strided_slice %221 {offsets = [0, 128], sizes = [2, 64], strides = [1, 1]} : vector<2x256xf32> to vector<2x64xf32>
    %225 = vector.extract_strided_slice %221 {offsets = [0, 192], sizes = [2, 64], strides = [1, 1]} : vector<2x256xf32> to vector<2x64xf32>
    %226 = arith.mulf %223, %208 : vector<2x64xf32>
    %227 = arith.mulf %222, %224 : vector<2x64xf32>
    %228 = arith.addf %226, %227 : vector<2x64xf32>
    %229 = math.tanh %228 : vector<2x64xf32>
    %230 = arith.mulf %225, %229 : vector<2x64xf32>
    %c0_56 = arith.constant 0 : index
    %c0_57 = arith.constant 0 : index
    %231 = vector.load %arg8[%c0_56, %c0_57] : memref<1x64xf32, #tpu.memory_space<vmem>>, vector<1x64xf32>
    %232 = vector.broadcast %231 : vector<1x64xf32> to vector<2x64xf32>
    %233 = arith.mulf %230, %232 : vector<2x64xf32>
    %cst_58 = arith.constant dense<0.000000e+00> : vector<2xf32>
    %234 = vector.multi_reduction <add>, %233, %cst_58 [1] : vector<2x64xf32> to vector<2xf32>
    %235 = vector.shape_cast %234 : vector<2xf32> to vector<2x1xf32>
    %c0_59 = arith.constant 0 : index
    %c0_60 = arith.constant 0 : index
    %236 = vector.load %arg9[%c0_59, %c0_60] : memref<1x1xf32, #tpu.memory_space<vmem>>, vector<1x1xf32>
    %237 = vector.broadcast %236 : vector<1x1xf32> to vector<2x1xf32>
    %238 = arith.addf %235, %237 : vector<2x1xf32>
    %239 = vector.shape_cast %238 : vector<2x1xf32> to vector<2x1xf32>
    %240 = vector.broadcast %239 : vector<2x1xf32> to vector<2x128xf32>
    %c0_61 = arith.constant 0 : index
    %c0_62 = arith.constant 0 : index
    %241 = vector.load %arg10[%c0_61, %c0_62] : memref<2x128xf32, #tpu.memory_space<vmem>>, vector<2x128xf32>
    tpu.vector_store %arg10[%c0_61, %c0_62], %240 {strides = array<i32>} : memref<2x128xf32, #tpu.memory_space<vmem>>, vector<2x128xf32>,
    return
  }
}

</mosaic_0001>

<llo_original>
// kernel: tpu_custom_call.1
$region0: #{tpu_custom_call.1}
  #allocation0 [shape = 'u32[]', space=smem, size = 0x4, offset = 0x4, fixed_abs, tag = 'smem constant byte address 0x4 - core index']
  #allocation1 [shape = 'u32[72,128]{1,0:T(1,128)}', space=vmem, size = 0x9000, scoped, tag = 'internal scratch']
  #allocation2 [shape = 'f32[1,1]{1,0:T(1,128)S(1)}', space=vmem, size = 0x200, scoped, tag = 'scoped memory for tpu_custom_call.1']
  %s0 = inlined_call_operand.vmem [shape: f32[16,64], index: 0, kind: input, shape index: {}]
  %s1 = inlined_call_operand.vmem [shape: f32[64,64], index: 1, kind: input, shape index: {}]
  %s2 = inlined_call_operand.vmem [shape: f32[1,64], index: 2, kind: input, shape index: {}]
  %s3 = inlined_call_operand.vmem [shape: f32[64,32], index: 3, kind: input, shape index: {}]
  %s4 = inlined_call_operand.vmem [shape: f32[1,32], index: 4, kind: input, shape index: {}]
  %s5 = inlined_call_operand.hbm [shape: f32[32,256], index: 5, kind: input, shape index: {}]
  %s6 = inlined_call_operand.hbm [shape: f32[64,256], index: 6, kind: input, shape index: {}]
  %s7 = inlined_call_operand.vmem [shape: f32[1,256], index: 7, kind: input, shape index: {}]
  %s8 = inlined_call_operand.vmem [shape: f32[1,64], index: 8, kind: input, shape index: {}]
  %s9 = inlined_call_operand.<no memory space> [shape: f32[1,1], index: 9, kind: input, shape index: {}]
  %s10 = inlined_call_operand.hbm [shape: f32[2,128], index: 10, kind: output, shape index: {}]
  %s11 = sld [smem:[#allocation0]]
  $region58: #{tpu_custom_call.1} parent=0
    _
  %s13 = ssub.s32 1, %s11
  %s14 = scalar_select 0, %s13, %s11
  %v15 = vstv %s9
  %16 = vst [vmem:[#allocation2] sm:$0x1] %v15
  $region1: #{tpu_custom_call.1} parent=0
    #allocation3 [shape = 'u8[32768]{0}', space=vmem, size = 0x8000, scoped, tag = 'input window, operand 5, single buffered']
    #allocation4 [shape = 's32[1]{0}', space=sflag, size = 0x4, scoped, tag = 'scoped memory for tpu_custom_call.1']
    #allocation5 [shape = 's32[1]{0}', space=sflag, size = 0x4, scoped, tag = 'scoped memory for tpu_custom_call.1']
    #allocation6 [shape = 'u8[65536]{0}', space=vmem, size = 0x10000, scoped, tag = 'input window, operand 6, single buffered']
    #allocation7 [shape = 's32[1]{0}', space=sflag, size = 0x4, scoped, tag = 'scoped memory for tpu_custom_call.1']
    #allocation8 [shape = 'u8[1024]{0}', space=vmem, size = 0x400, scoped, tag = 'output window, operand 0, single buffered']
    %17 = vsyncpa [#allocation4], 0
    %18 = vsyncpa [#allocation7], 0
    %19 = vsyncpa [#allocation5], 0
    // Predicated region
    $region2: #{tpu_custom_call.1} parent=1 // pred_check
      _
    $region3: #{tpu_custom_call.1} parent=1 // pred_check_branch
      %21 = sbr.rel (0) target = $region5
    $region4: #{tpu_custom_call.1} parent=1 // pred_region
      _
    $region5: #{tpu_custom_call.1} parent=1 // pred_fallthru
      _
    // Predicated region
    $region6: #{tpu_custom_call.1} parent=1 // pred_check
      _
    $region7: #{tpu_custom_call.1} parent=1 // pred_check_branch
      %23 = sbr.rel (0) target = $region9
    $region8: #{tpu_custom_call.1} parent=1 // pred_region
      _
    $region9: #{tpu_custom_call.1} parent=1 // pred_fallthru
      _
    // Predicated region
    $region10: #{tpu_custom_call.1} parent=1 // pred_check
      _
    $region11: #{tpu_custom_call.1} parent=1 // pred_check_branch
      %25 = sbr.rel (0) target = $region13
    $region12: #{tpu_custom_call.1} parent=1 // pred_region
      _
    $region13: #{tpu_custom_call.1} parent=1 // pred_fallthru
      _
    // Predicated region
    $region14: #{tpu_custom_call.1} parent=1 // pred_check
      _
    $region15: #{tpu_custom_call.1} parent=1 // pred_check_branch
      %27 = sbr.rel (0) target = $region17
    $region16: #{tpu_custom_call.1} parent=1 // pred_region
      _
    $region17: #{tpu_custom_call.1} parent=1 // pred_fallthru
      _
    // Predicated region
    $region18: #{tpu_custom_call.1} parent=1 // pred_check
      _
    $region19: #{tpu_custom_call.1} parent=1 // pred_check_branch
      %29 = sbr.rel (0) target = $region21
    $region20: #{tpu_custom_call.1} parent=1 // pred_region
      _
    $region21: #{tpu_custom_call.1} parent=1 // pred_fallthru
      _
    // Predicated region
    $region22: #{tpu_custom_call.1} parent=1 // pred_check
      _
    $region23: #{tpu_custom_call.1} parent=1 // pred_check_branch
      %31 = sbr.rel (0) target = $region25
    $region24: #{tpu_custom_call.1} parent=1 // pred_region
      %33 = vsyncadd [#allocation4], 0
      %s34 = sshll.u32 %s5, 4
      %s35 = int_to_ptr.hbm [resolvable:$true] %s34
      %s36 = sshll.u32 [#allocation3], 4
      %s37 = int_to_ptr.vmem [resolvable:$true] %s36
      %42 = dma.hbm_to_vmem [thread:$0]  %s35, 1024, %s37, [#allocation4], 256, 256, 16
    $region25: #{tpu_custom_call.1} parent=1 // pred_fallthru
      _
    // Predicated region
    $region26: #{tpu_custom_call.1} parent=1 // pred_check
      _
    $region27: #{tpu_custom_call.1} parent=1 // pred_check_branch
      %44 = sbr.rel (0) target = $region29
    $region28: #{tpu_custom_call.1} parent=1 // pred_region
      %46 = vsyncadd [#allocation7], 0
      %s47 = sshll.u32 %s6, 4
      %s48 = int_to_ptr.hbm [resolvable:$true] %s47
      %s49 = sshll.u32 [#allocation6], 4
      %s50 = int_to_ptr.vmem [resolvable:$true] %s49
      %55 = dma.hbm_to_vmem [thread:$0]  %s48, 2048, %s50, [#allocation7], 256, 256, 16
    $region29: #{tpu_custom_call.1} parent=1 // pred_fallthru
      _
    // Predicated region
    $region30: #{tpu_custom_call.1} parent=1 // pred_check
      _
    $region31: #{tpu_custom_call.1} parent=1 // pred_check_branch
      %57 = sbr.rel (0) target = $region33
    $region32: #{tpu_custom_call.1} parent=1 // pred_region
      _
    $region33: #{tpu_custom_call.1} parent=1 // pred_fallthru
      _
    // Predicated region
    $region34: #{tpu_custom_call.1} parent=1 // pred_check
      _
    $region35: #{tpu_custom_call.1} parent=1 // pred_check_branch
      %59 = sbr.rel (0) target = $region37
    $region36: #{tpu_custom_call.1} parent=1 // pred_region
      _
    $region37: #{tpu_custom_call.1} parent=1 // pred_fallthru
      _
    // Predicated region
    $region38: #{tpu_custom_call.1} parent=1 // pred_check
      _
    $region39: #{tpu_custom_call.1} parent=1 // pred_check_branch
      %61 = sbr.rel (0) target = $region41
    $region40: #{tpu_custom_call.1} parent=1 // pred_region
      _
    $region41: #{tpu_custom_call.1} parent=1 // pred_fallthru
      _
    // Predicated region
    $region42: #{tpu_custom_call.1} parent=1 // pred_check
      _
    $region43: #{tpu_custom_call.1} parent=1 // pred_check_branch
      %63 = sbr.rel (0) target = $region45
    $region44: #{tpu_custom_call.1} parent=1 // pred_region
      %65 = dma.done [#allocation4], 1024
    $region45: #{tpu_custom_call.1} parent=1 // pred_fallthru
      _
    // Predicated region
    $region46: #{tpu_custom_call.1} parent=1 // pred_check
      _
    $region47: #{tpu_custom_call.1} parent=1 // pred_check_branch
      %67 = sbr.rel (0) target = $region49
    $region48: #{tpu_custom_call.1} parent=1 // pred_region
      %69 = dma.done [#allocation7], 2048
    $region49: #{tpu_custom_call.1} parent=1 // pred_fallthru
      _
    %v70 = vld [vmem:[%s0] sm:$0xff]
    %v71 = vld [vmem:[%s0 + $0x8] sm:$0xff]
    %v72 = vld [vmem:[%s1] sm:$0xff]
    %v73 = vld [vmem:[%s1 + $0x8] sm:$0xff]
    %v74 = vld [vmem:[%s1 + $0x10] sm:$0xff]
    %v75 = vld [vmem:[%s1 + $0x18] sm:$0xff]
    %v76 = vld [vmem:[%s1 + $0x20] sm:$0xff]
    %v77 = vld [vmem:[%s1 + $0x28] sm:$0xff]
    %v78 = vld [vmem:[%s1 + $0x30] sm:$0xff]
    %v79 = vld [vmem:[%s1 + $0x38] sm:$0xff]
    %v80 = vld [vmem:[%s2] sm:$0x1]
    %v82 = vperm.slane %v80, 0
    %vm84 = vcmask 523264
    %v86 = vsel %vm84, %v70, 0
    %v89 = vsel %vm84, %v71, 0
    %91 = vmatpush.msra.mxu0 0.0
    %92 = vmatpush.msra.mxu0 0.0
    %93 = vmatpush.msra.mxu0 0.0
    %94 = vmatpush.msra.mxu0 0.0
    %95 = vmatpush.msra.mxu0 0.0
    %96 = vmatpush.msra.mxu0 0.0
    %97 = vmatpush.msra.mxu0 0.0
    %98 = vmatpush.msra.mxu0 0.0
    %99 = vmatpush.msra.mxu0 %v79
    %100 = vmatpush.msra.mxu0 %v78
    %101 = vmatpush.msra.mxu0 %v77
    %102 = vmatpush.msra.mxu0 %v76
    %103 = vmatpush.msra.mxu0 %v75
    %104 = vmatpush.msra.mxu0 %v74
    %105 = vmatpush.msra.mxu0 %v73
    %106 = vmatpush.msra.mxu0 %v72
    %107 = vmatmul.f32.gmra.mxu0 %v86
    %v108 = vpop.f32.mrf.mxu0
    %v109 = vadd.f32 %v82, %v108
    %110 = vmatmul.f32.gmra.mxu0 %v89
    %v111 = vpop.f32.mrf.mxu0
    %v112 = vadd.f32 %v82, %v111
    %113 = vdwg.mxu0
    %v114 = vmax.f32 %v109, 0.0
    %v115 = vmax.f32 %v112, 0.0
    %v116 = vld [vmem:[%s3] sm:$0xff]
    %v117 = vld [vmem:[%s3 + $0x8] sm:$0xff]
    %v118 = vld [vmem:[%s3 + $0x10] sm:$0xff]
    %v119 = vld [vmem:[%s3 + $0x18] sm:$0xff]
    %v120 = vld [vmem:[%s3 + $0x20] sm:$0xff]
    %v121 = vld [vmem:[%s3 + $0x28] sm:$0xff]
    %v122 = vld [vmem:[%s3 + $0x30] sm:$0xff]
    %v123 = vld [vmem:[%s3 + $0x38] sm:$0xff]
    %v124 = vld [vmem:[%s4] sm:$0x1]
    %v126 = vperm.slane %v124, 0
    %v129 = vsel %vm84, %v114, 0
    %v132 = vsel %vm84, %v115, 0
    %134 = vmatpush.msra.mxu0 0.0
    %135 = vmatpush.msra.mxu0 0.0
    %136 = vmatpush.msra.mxu0 0.0
    %137 = vmatpush.msra.mxu0 0.0
    %138 = vmatpush.msra.mxu0 0.0
    %139 = vmatpush.msra.mxu0 0.0
    %140 = vmatpush.msra.mxu0 0.0
    %141 = vmatpush.msra.mxu0 0.0
    %142 = vmatpush.msra.mxu0 %v123
    %143 = vmatpush.msra.mxu0 %v122
    %144 = vmatpush.msra.mxu0 %v121
    %145 = vmatpush.msra.mxu0 %v120
    %146 = vmatpush.msra.mxu0 %v119
    %147 = vmatpush.msra.mxu0 %v118
    %148 = vmatpush.msra.mxu0 %v117
    %149 = vmatpush.msra.mxu0 %v116
    %150 = vmatmul.f32.gmra.mxu0 %v129
    %v151 = vpop.f32.mrf.mxu0
    %v152 = vadd.f32 %v126, %v151
    %153 = vmatmul.f32.gmra.mxu0 %v132
    %v154 = vpop.f32.mrf.mxu0
    %v155 = vadd.f32 %v126, %v154
    %156 = vdwg.mxu0
    %v157 = vmax.f32 %v152, 0.0
    %v158 = vmax.f32 %v155, 0.0
    %v159 = vld [vmem:[#allocation3] sm:$0xff]
    %v160 = vld [vmem:[#allocation3 + $0x8] sm:$0xff]
    %v161 = vld [vmem:[#allocation3 + $0x10] sm:$0xff]
    %v162 = vld [vmem:[#allocation3 + $0x18] sm:$0xff]
    %v163 = vld [vmem:[#allocation3 + $0x20] sm:$0xff]
    %v164 = vld [vmem:[#allocation3 + $0x28] sm:$0xff]
    %v165 = vld [vmem:[#allocation3 + $0x30] sm:$0xff]
    %v166 = vld [vmem:[#allocation3 + $0x38] sm:$0xff]
    %v167 = vld [vmem:[%s7] sm:$0x3]
    %v169 = vperm.slane %v167, 0
    %v170 = vperm.slane %v167, 1
    %vm173 = vcmask 261120
    %v175 = vsel %vm173, %v157, 0
    %v178 = vsel %vm173, %v158, 0
    %180 = vmatpush.msra.mxu0 0.0
    %181 = vmatpush.msra.mxu0 0.0
    %182 = vmatpush.msra.mxu0 0.0
    %183 = vmatpush.msra.mxu0 0.0
    %184 = vmatpush.msra.mxu0 0.0
    %185 = vmatpush.msra.mxu0 0.0
    %186 = vmatpush.msra.mxu0 0.0
    %187 = vmatpush.msra.mxu0 0.0
    %188 = vmatpush.msra.mxu0 0.0
    %189 = vmatpush.msra.mxu0 0.0
    %190 = vmatpush.msra.mxu0 0.0
    %191 = vmatpush.msra.mxu0 0.0
    %192 = vmatpush.msra.mxu0 %v165
    %193 = vmatpush.msra.mxu0 %v163
    %194 = vmatpush.msra.mxu0 %v161
    %195 = vmatpush.msra.mxu0 %v159
    %196 = vmatmul.f32.gmra.mxu0 %v175
    %v197 = vpop.f32.mrf.mxu0
    %v198 = vadd.f32 %v169, %v197
    %199 = vmatmul.f32.gmra.mxu0 %v178
    %v200 = vpop.f32.mrf.mxu0
    %v201 = vadd.f32 %v169, %v200
    %202 = vdwg.mxu0
    %203 = vmatpush.msra.mxu0 0.0
    %204 = vmatpush.msra.mxu0 0.0
    %205 = vmatpush.msra.mxu0 0.0
    %206 = vmatpush.msra.mxu0 0.0
    %207 = vmatpush.msra.mxu0 0.0
    %208 = vmatpush.msra.mxu0 0.0
    %209 = vmatpush.msra.mxu0 0.0
    %210 = vmatpush.msra.mxu0 0.0
    %211 = vmatpush.msra.mxu0 0.0
    %212 = vmatpush.msra.mxu0 0.0
    %213 = vmatpush.msra.mxu0 0.0
    %214 = vmatpush.msra.mxu0 0.0
    %215 = vmatpush.msra.mxu0 %v166
    %216 = vmatpush.msra.mxu0 %v164
    %217 = vmatpush.msra.mxu0 %v162
    %218 = vmatpush.msra.mxu0 %v160
    %219 = vmatmul.f32.gmra.mxu0 %v175
    %v220 = vpop.f32.mrf.mxu0
    %v221 = vadd.f32 %v170, %v220
    %222 = vmatmul.f32.gmra.mxu0 %v178
    %v223 = vpop.f32.mrf.mxu0
    %v224 = vadd.f32 %v170, %v223
    %225 = vdwg.mxu0
    %v226 = vlaneseq
    %v227 = vand.u32 %v226, 127
    %v228 = vadd.s32 %v227, 128
    %vm229 = vcmp.ge.s32.totalorder %v227, 128
    %vm230 = vcmp.ge.s32.totalorder %v228, 128
    %vm231 = vcmp.lt.s32.totalorder %v227, 192
    %vm232 = vcmp.lt.s32.totalorder %v228, 192
    %vm233 = vmand %vm229, %vm231
    %vm234 = vmand %vm230, %vm232
    %vm235 = vcmp.lt.s32.totalorder %v227, 0
    %v236 = vsub.s32 0, %v227
    %v237 = vsel %vm235, %v236, %v227
    %v238 = vshrl.u32 %v237, 6
    %v239 = vand.u32 %v237, 63
    %v240 = vsub.s32 0, %v239
    %v241 = vsel %vm235, %v240, %v239
    %vm242 = vcmp.lt.s32.totalorder %v228, 0
    %v243 = vsub.s32 0, %v228
    %v244 = vsel %vm242, %v243, %v228
    %v245 = vshrl.u32 %v244, 6
    %v246 = vand.u32 %v244, 63
    %v247 = vsub.s32 0, %v246
    %v248 = vsel %vm242, %v247, %v246
    %vm249 = vcmp.ne.s32.totalorder %v241, 0
    %vm250 = vcmp.ne.s32.totalorder %v248, 0
    %vm251 = vcmp.lt.s32.totalorder %v241, 0
    %vm252 = vcmp.lt.s32.totalorder %v248, 0
    %vm253 = vmand %vm251, %vm249
    %vm254 = vmand %vm252, %vm250
    %v255 = vadd.s32 %v241, 64
    %v256 = vadd.s32 %v248, 64
    %v257 = vsel %vm253, %v255, %v241
    %v258 = vsel %vm254, %v256, %v248
    %vm259 = vcmp.lt.s32.totalorder %v257, 32
    %vm260 = vcmp.lt.s32.totalorder %v258, 32
    %v263 = vrot.slane %v201, 6
    %v264 = vrot.slane %v224, 6
    %v267 = vsel %vm259, %v198, %v263
    %v268 = vsel %vm260, %v221, %v264
    %v269 = vrot.slane %v201, 2
    %v270 = vrot.slane %v224, 2
    %v273 = vsel %vm259, %v198, %v269
    %v274 = vsel %vm260, %v221, %v270
    %v277 = vrot.slane %v198, 6
    %v278 = vrot.slane %v221, 6
    %v281 = vsel %vm259, %v201, %v277
    %v282 = vsel %vm260, %v224, %v278
    %v283 = vrot.slane %v198, 2
    %v284 = vrot.slane %v221, 2
    %v287 = vsel %vm259, %v201, %v283
    %v288 = vsel %vm260, %v224, %v284
    %v289 = vld [vmem:[#allocation6] sm:$0xff]
    %v290 = vld [vmem:[#allocation6 + $0x8] sm:$0xff]
    %v291 = vld [vmem:[#allocation6 + $0x10] sm:$0xff]
    %v292 = vld [vmem:[#allocation6 + $0x18] sm:$0xff]
    %v293 = vld [vmem:[#allocation6 + $0x20] sm:$0xff]
    %v294 = vld [vmem:[#allocation6 + $0x28] sm:$0xff]
    %v295 = vld [vmem:[#allocation6 + $0x30] sm:$0xff]
    %v296 = vld [vmem:[#allocation6 + $0x38] sm:$0xff]
    %v297 = vld [vmem:[#allocation6 + $0x40] sm:$0xff]
    %v298 = vld [vmem:[#allocation6 + $0x48] sm:$0xff]
    %v299 = vld [vmem:[#allocation6 + $0x50] sm:$0xff]
    %v300 = vld [vmem:[#allocation6 + $0x58] sm:$0xff]
    %v301 = vld [vmem:[#allocation6 + $0x60] sm:$0xff]
    %v302 = vld [vmem:[#allocation6 + $0x68] sm:$0xff]
    %v303 = vld [vmem:[#allocation6 + $0x70] sm:$0xff]
    %v304 = vld [vmem:[#allocation6 + $0x78] sm:$0xff]
    %v306 = vsel %vm84, 0.0, 0
    %308 = vmatpush.msra.mxu0 0.0
    %309 = vmatpush.msra.mxu0 0.0
    %310 = vmatpush.msra.mxu0 0.0
    %311 = vmatpush.msra.mxu0 0.0
    %312 = vmatpush.msra.mxu0 0.0
    %313 = vmatpush.msra.mxu0 0.0
    %314 = vmatpush.msra.mxu0 0.0
    %315 = vmatpush.msra.mxu0 0.0
    %316 = vmatpush.msra.mxu0 %v303
    %317 = vmatpush.msra.mxu0 %v301
    %318 = vmatpush.msra.mxu0 %v299
    %319 = vmatpush.msra.mxu0 %v297
    %320 = vmatpush.msra.mxu0 %v295
    %321 = vmatpush.msra.mxu0 %v293
    %322 = vmatpush.msra.mxu0 %v291
    %323 = vmatpush.msra.mxu0 %v289
    %324 = vmatmul.f32.gmra.mxu0 %v306
    %v325 = vpop.f32.mrf.mxu0
    %v326 = vadd.f32 0.0, %v325
    %327 = vdwg.mxu0
    %328 = vmatpush.msra.mxu0 0.0
    %329 = vmatpush.msra.mxu0 0.0
    %330 = vmatpush.msra.mxu0 0.0
    %331 = vmatpush.msra.mxu0 0.0
    %332 = vmatpush.msra.mxu0 0.0
    %333 = vmatpush.msra.mxu0 0.0
    %334 = vmatpush.msra.mxu0 0.0
    %335 = vmatpush.msra.mxu0 0.0
    %336 = vmatpush.msra.mxu0 %v304
    %337 = vmatpush.msra.mxu0 %v302
    %338 = vmatpush.msra.mxu0 %v300
    %339 = vmatpush.msra.mxu0 %v298
    %340 = vmatpush.msra.mxu0 %v296
    %341 = vmatpush.msra.mxu0 %v294
    %342 = vmatpush.msra.mxu0 %v292
    %343 = vmatpush.msra.mxu0 %v290
    %344 = vmatmul.f32.gmra.mxu0 %v306
    %v345 = vpop.f32.mrf.mxu0
    %v346 = vadd.f32 0.0, %v345
    %347 = vdwg.mxu0
    %v348 = vadd.f32 %v267, %v326
    %v349 = vadd.f32 %v268, %v346
    %v350 = vmul.f32 %v348, 0.5
    %v351 = vmul.f32 %v349, 0.5
    %v352 = vsel %vm233, %v348, %v350
    %v353 = vsel %vm234, %v349, %v351
    %v354 = vtanh.pop %v352
    %v355 = vtanh.pop %v353
    %v356 = vadd.f32 %v354, 1.0
    %v357 = vadd.f32 %v355, 1.0
    %v358 = vmul.f32 %v356, 0.5
    %v359 = vmul.f32 %v357, 0.5
    %v360 = vsel %vm233, %v354, %v358
    %v361 = vsel %vm234, %v355, %v359
    %v362 = vmul.f32 %v360, 0.0
    %v363 = vmul.f32 %v360, %v361
    %365 = vrot.lane.b32.xlu0 %v363, 64
    %v366 = vpop.permute.xlu0 %365
    %v368 = vadd.f32 %v362, %v366
    %v369 = vtanh.pop %v368
    %v370 = vmul.f32 %v361, %v369
    %372 = vrot.lane.b32.xlu0 %v370, 64
    %v373 = vpop.permute.xlu0 %372
    %v374 = vsel %vm84, %v373, 0
    %376 = vmatpush.msra.mxu0 0.0
    %377 = vmatpush.msra.mxu0 0.0
    %378 = vmatpush.msra.mxu0 0.0
    %379 = vmatpush.msra.mxu0 0.0
    %380 = vmatpush.msra.mxu0 0.0
    %381 = vmatpush.msra.mxu0 0.0
    %382 = vmatpush.msra.mxu0 0.0
    %383 = vmatpush.msra.mxu0 0.0
    %384 = vmatpush.msra.mxu0 %v303
    %385 = vmatpush.msra.mxu0 %v301
    %386 = vmatpush.msra.mxu0 %v299
    %387 = vmatpush.msra.mxu0 %v297
    %388 = vmatpush.msra.mxu0 %v295
    %389 = vmatpush.msra.mxu0 %v293
    %390 = vmatpush.msra.mxu0 %v291
    %391 = vmatpush.msra.mxu0 %v289
    %392 = vmatmul.f32.gmra.mxu0 %v374
    %v393 = vpop.f32.mrf.mxu0
    %v394 = vadd.f32 0.0, %v393
    %395 = vdwg.mxu0
    %396 = vmatpush.msra.mxu0 0.0
    %397 = vmatpush.msra.mxu0 0.0
    %398 = vmatpush.msra.mxu0 0.0
    %399 = vmatpush.msra.mxu0 0.0
    %400 = vmatpush.msra.mxu0 0.0
    %401 = vmatpush.msra.mxu0 0.0
    %402 = vmatpush.msra.mxu0 0.0
    %403 = vmatpush.msra.mxu0 0.0
    %404 = vmatpush.msra.mxu0 %v304
    %405 = vmatpush.msra.mxu0 %v302
    %406 = vmatpush.msra.mxu0 %v300
    %407 = vmatpush.msra.mxu0 %v298
    %408 = vmatpush.msra.mxu0 %v296
    %409 = vmatpush.msra.mxu0 %v294
    %410 = vmatpush.msra.mxu0 %v292
    %411 = vmatpush.msra.mxu0 %v290
    %412 = vmatmul.f32.gmra.mxu0 %v374
    %v413 = vpop.f32.mrf.mxu0
    %v414 = vadd.f32 0.0, %v413
    %415 = vdwg.mxu0
    %v418 = vrot.slane %v394, 6
    %v419 = vrot.slane %v414, 6
    %v422 = vadd.f32 %v273, %v418
    %v423 = vadd.f32 %v274, %v419
    %v424 = vmul.f32 %v422, 0.5
    %v425 = vmul.f32 %v423, 0.5
    %v426 = vsel %vm233, %v422, %v424
    %v427 = vsel %vm234, %v423, %v425
    %v428 = vtanh.pop %v426
    %v429 = vtanh.pop %v427
    %v430 = vadd.f32 %v428, 1.0
    %v431 = vadd.f32 %v429, 1.0
    %v432 = vmul.f32 %v430, 0.5
    %v433 = vmul.f32 %v431, 0.5
    %v434 = vsel %vm233, %v428, %v432
    %v435 = vsel %vm234, %v429, %v433
    %v437 = vrot.slane %v368, 6
    %v439 = vmul.f32 %v434, %v437
    %v440 = vmul.f32 %v434, %v435
    %442 = vrot.lane.b32.xlu0 %v440, 64
    %v443 = vpop.permute.xlu0 %442
    %v445 = vadd.f32 %v439, %v443
    %v446 = vtanh.pop %v445
    %v447 = vmul.f32 %v435, %v446
    %v449 = vrot.slane %v447, 2
    %450 = vrot.lane.b32.xlu0 %v449, 64
    %v451 = vpop.permute.xlu0 %450
    %v452 = vsel %vm84, %v451, 0
    %454 = vmatpush.msra.mxu0 0.0
    %455 = vmatpush.msra.mxu0 0.0
    %456 = vmatpush.msra.mxu0 0.0
    %457 = vmatpush.msra.mxu0 0.0
    %458 = vmatpush.msra.mxu0 0.0
    %459 = vmatpush.msra.mxu0 0.0
    %460 = vmatpush.msra.mxu0 0.0
    %461 = vmatpush.msra.mxu0 0.0
    %462 = vmatpush.msra.mxu0 %v303
    %463 = vmatpush.msra.mxu0 %v301
    %464 = vmatpush.msra.mxu0 %v299
    %465 = vmatpush.msra.mxu0 %v297
    %466 = vmatpush.msra.mxu0 %v295
    %467 = vmatpush.msra.mxu0 %v293
    %468 = vmatpush.msra.mxu0 %v291
    %469 = vmatpush.msra.mxu0 %v289
    %470 = vmatmul.f32.gmra.mxu0 %v452
    %v471 = vpop.f32.mrf.mxu0
    %v472 = vadd.f32 0.0, %v471
    %473 = vdwg.mxu0
    %474 = vmatpush.msra.mxu0 0.0
    %475 = vmatpush.msra.mxu0 0.0
    %476 = vmatpush.msra.mxu0 0.0
    %477 = vmatpush.msra.mxu0 0.0
    %478 = vmatpush.msra.mxu0 0.0
    %479 = vmatpush.msra.mxu0 0.0
    %480 = vmatpush.msra.mxu0 0.0
    %481 = vmatpush.msra.mxu0 0.0
    %482 = vmatpush.msra.mxu0 %v304
    %483 = vmatpush.msra.mxu0 %v302
    %484 = vmatpush.msra.mxu0 %v300
    %485 = vmatpush.msra.mxu0 %v298
    %486 = vmatpush.msra.mxu0 %v296
    %487 = vmatpush.msra.mxu0 %v294
    %488 = vmatpush.msra.mxu0 %v292
    %489 = vmatpush.msra.mxu0 %v290
    %490 = vmatmul.f32.gmra.mxu0 %v452
    %v491 = vpop.f32.mrf.mxu0
    %v492 = vadd.f32 0.0, %v491
    %493 = vdwg.mxu0
    %v496 = vrot.slane %v472, 4
    %v497 = vrot.slane %v492, 4
    %v500 = vadd.f32 %v267, %v496
    %v501 = vadd.f32 %v268, %v497
    %v502 = vmul.f32 %v500, 0.5
    %v503 = vmul.f32 %v501, 0.5
    %v504 = vsel %vm233, %v500, %v502
    %v505 = vsel %vm234, %v501, %v503
    %v506 = vtanh.pop %v504
    %v507 = vtanh.pop %v505
    %v508 = vadd.f32 %v506, 1.0
    %v509 = vadd.f32 %v507, 1.0
    %v510 = vmul.f32 %v508, 0.5
    %v511 = vmul.f32 %v509, 0.5
    %v512 = vsel %vm233, %v506, %v510
    %v513 = vsel %vm234, %v507, %v511
    %v515 = vrot.slane %v445, 6
    %v517 = vmul.f32 %v512, %v515
    %v518 = vmul.f32 %v512, %v513
    %520 = vrot.lane.b32.xlu0 %v518, 64
    %v521 = vpop.permute.xlu0 %520
    %v523 = vadd.f32 %v517, %v521
    %v524 = vtanh.pop %v523
    %v525 = vmul.f32 %v513, %v524
    %v527 = vrot.slane %v525, 4
    %528 = vrot.lane.b32.xlu0 %v527, 64
    %v529 = vpop.permute.xlu0 %528
    %v530 = vsel %vm84, %v529, 0
    %532 = vmatpush.msra.mxu0 0.0
    %533 = vmatpush.msra.mxu0 0.0
    %534 = vmatpush.msra.mxu0 0.0
    %535 = vmatpush.msra.mxu0 0.0
    %536 = vmatpush.msra.mxu0 0.0
    %537 = vmatpush.msra.mxu0 0.0
    %538 = vmatpush.msra.mxu0 0.0
    %539 = vmatpush.msra.mxu0 0.0
    %540 = vmatpush.msra.mxu0 %v303
    %541 = vmatpush.msra.mxu0 %v301
    %542 = vmatpush.msra.mxu0 %v299
    %543 = vmatpush.msra.mxu0 %v297
    %544 = vmatpush.msra.mxu0 %v295
    %545 = vmatpush.msra.mxu0 %v293
    %546 = vmatpush.msra.mxu0 %v291
    %547 = vmatpush.msra.mxu0 %v289
    %548 = vmatmul.f32.gmra.mxu0 %v530
    %v549 = vpop.f32.mrf.mxu0
    %v550 = vadd.f32 0.0, %v549
    %551 = vdwg.mxu0
    %552 = vmatpush.msra.mxu0 0.0
    %553 = vmatpush.msra.mxu0 0.0
    %554 = vmatpush.msra.mxu0 0.0
    %555 = vmatpush.msra.mxu0 0.0
    %556 = vmatpush.msra.mxu0 0.0
    %557 = vmatpush.msra.mxu0 0.0
    %558 = vmatpush.msra.mxu0 0.0
    %559 = vmatpush.msra.mxu0 0.0
    %560 = vmatpush.msra.mxu0 %v304
    %561 = vmatpush.msra.mxu0 %v302
    %562 = vmatpush.msra.mxu0 %v300
    %563 = vmatpush.msra.mxu0 %v298
    %564 = vmatpush.msra.mxu0 %v296
    %565 = vmatpush.msra.mxu0 %v294
    %566 = vmatpush.msra.mxu0 %v292
    %567 = vmatpush.msra.mxu0 %v290
    %568 = vmatmul.f32.gmra.mxu0 %v530
    %v569 = vpop.f32.mrf.mxu0
    %v570 = vadd.f32 0.0, %v569
    %571 = vdwg.mxu0
    %v574 = vrot.slane %v550, 2
    %v575 = vrot.slane %v570, 2
    %v578 = vadd.f32 %v273, %v574
    %v579 = vadd.f32 %v274, %v575
    %v580 = vmul.f32 %v578, 0.5
    %v581 = vmul.f32 %v579, 0.5
    %v582 = vsel %vm233, %v578, %v580
    %v583 = vsel %vm234, %v579, %v581
    %v584 = vtanh.pop %v582
    %v585 = vtanh.pop %v583
    %v586 = vadd.f32 %v584, 1.0
    %v587 = vadd.f32 %v585, 1.0
    %v588 = vmul.f32 %v586, 0.5
    %v589 = vmul.f32 %v587, 0.5
    %v590 = vsel %vm233, %v584, %v588
    %v591 = vsel %vm234, %v585, %v589
    %v593 = vrot.slane %v523, 6
    %v595 = vmul.f32 %v590, %v593
    %v596 = vmul.f32 %v590, %v591
    %598 = vrot.lane.b32.xlu0 %v596, 64
    %v599 = vpop.permute.xlu0 %598
    %v601 = vadd.f32 %v595, %v599
    %v602 = vtanh.pop %v601
    %v603 = vmul.f32 %v591, %v602
    %v605 = vrot.slane %v603, 6
    %606 = vrot.lane.b32.xlu0 %v605, 64
    %v607 = vpop.permute.xlu0 %606
    %v608 = vsel %vm84, %v607, 0
    %610 = vmatpush.msra.mxu0 0.0
    %611 = vmatpush.msra.mxu0 0.0
    %612 = vmatpush.msra.mxu0 0.0
    %613 = vmatpush.msra.mxu0 0.0
    %614 = vmatpush.msra.mxu0 0.0
    %615 = vmatpush.msra.mxu0 0.0
    %616 = vmatpush.msra.mxu0 0.0
    %617 = vmatpush.msra.mxu0 0.0
    %618 = vmatpush.msra.mxu0 %v303
    %619 = vmatpush.msra.mxu0 %v301
    %620 = vmatpush.msra.mxu0 %v299
    %621 = vmatpush.msra.mxu0 %v297
    %622 = vmatpush.msra.mxu0 %v295
    %623 = vmatpush.msra.mxu0 %v293
    %624 = vmatpush.msra.mxu0 %v291
    %625 = vmatpush.msra.mxu0 %v289
    %626 = vmatmul.f32.gmra.mxu0 %v608
    %v627 = vpop.f32.mrf.mxu0
    %v628 = vadd.f32 0.0, %v627
    %629 = vdwg.mxu0
    %630 = vmatpush.msra.mxu0 0.0
    %631 = vmatpush.msra.mxu0 0.0
    %632 = vmatpush.msra.mxu0 0.0
    %633 = vmatpush.msra.mxu0 0.0
    %634 = vmatpush.msra.mxu0 0.0
    %635 = vmatpush.msra.mxu0 0.0
    %636 = vmatpush.msra.mxu0 0.0
    %637 = vmatpush.msra.mxu0 0.0
    %638 = vmatpush.msra.mxu0 %v304
    %639 = vmatpush.msra.mxu0 %v302
    %640 = vmatpush.msra.mxu0 %v300
    %641 = vmatpush.msra.mxu0 %v298
    %642 = vmatpush.msra.mxu0 %v296
    %643 = vmatpush.msra.mxu0 %v294
    %644 = vmatpush.msra.mxu0 %v292
    %645 = vmatpush.msra.mxu0 %v290
    %646 = vmatmul.f32.gmra.mxu0 %v608
    %v647 = vpop.f32.mrf.mxu0
    %v648 = vadd.f32 0.0, %v647
    %649 = vdwg.mxu0
    %v650 = vadd.f32 %v281, %v628
    %v651 = vadd.f32 %v282, %v648
    %v652 = vmul.f32 %v650, 0.5
    %v653 = vmul.f32 %v651, 0.5
    %v654 = vsel %vm233, %v650, %v652
    %v655 = vsel %vm234, %v651, %v653
    %v656 = vtanh.pop %v654
    %v657 = vtanh.pop %v655
    %v658 = vadd.f32 %v656, 1.0
    %v659 = vadd.f32 %v657, 1.0
    %v660 = vmul.f32 %v658, 0.5
    %v661 = vmul.f32 %v659, 0.5
    %v662 = vsel %vm233, %v656, %v660
    %v663 = vsel %vm234, %v657, %v661
    %v665 = vrot.slane %v601, 6
    %v667 = vmul.f32 %v662, %v665
    %v668 = vmul.f32 %v662, %v663
    %670 = vrot.lane.b32.xlu0 %v668, 64
    %v671 = vpop.permute.xlu0 %670
    %v673 = vadd.f32 %v667, %v671
    %v674 = vtanh.pop %v673
    %v675 = vmul.f32 %v663, %v674
    %677 = vrot.lane.b32.xlu0 %v675, 64
    %v678 = vpop.permute.xlu0 %677
    %v679 = vsel %vm84, %v678, 0
    %681 = vmatpush.msra.mxu0 0.0
    %682 = vmatpush.msra.mxu0 0.0
    %683 = vmatpush.msra.mxu0 0.0
    %684 = vmatpush.msra.mxu0 0.0
    %685 = vmatpush.msra.mxu0 0.0
    %686 = vmatpush.msra.mxu0 0.0
    %687 = vmatpush.msra.mxu0 0.0
    %688 = vmatpush.msra.mxu0 0.0
    %689 = vmatpush.msra.mxu0 %v303
    %690 = vmatpush.msra.mxu0 %v301
    %691 = vmatpush.msra.mxu0 %v299
    %692 = vmatpush.msra.mxu0 %v297
    %693 = vmatpush.msra.mxu0 %v295
    %694 = vmatpush.msra.mxu0 %v293
    %695 = vmatpush.msra.mxu0 %v291
    %696 = vmatpush.msra.mxu0 %v289
    %697 = vmatmul.f32.gmra.mxu0 %v679
    %v698 = vpop.f32.mrf.mxu0
    %v699 = vadd.f32 0.0, %v698
    %700 = vdwg.mxu0
    %701 = vmatpush.msra.mxu0 0.0
    %702 = vmatpush.msra.mxu0 0.0
    %703 = vmatpush.msra.mxu0 0.0
    %704 = vmatpush.msra.mxu0 0.0
    %705 = vmatpush.msra.mxu0 0.0
    %706 = vmatpush.msra.mxu0 0.0
    %707 = vmatpush.msra.mxu0 0.0
    %708 = vmatpush.msra.mxu0 0.0
    %709 = vmatpush.msra.mxu0 %v304
    %710 = vmatpush.msra.mxu0 %v302
    %711 = vmatpush.msra.mxu0 %v300
    %712 = vmatpush.msra.mxu0 %v298
    %713 = vmatpush.msra.mxu0 %v296
    %714 = vmatpush.msra.mxu0 %v294
    %715 = vmatpush.msra.mxu0 %v292
    %716 = vmatpush.msra.mxu0 %v290
    %717 = vmatmul.f32.gmra.mxu0 %v679
    %v718 = vpop.f32.mrf.mxu0
    %v719 = vadd.f32 0.0, %v718
    %720 = vdwg.mxu0
    %v723 = vrot.slane %v699, 6
    %v724 = vrot.slane %v719, 6
    %v727 = vadd.f32 %v287, %v723
    %v728 = vadd.f32 %v288, %v724
    %v729 = vmul.f32 %v727, 0.5
    %v730 = vmul.f32 %v728, 0.5
    %v731 = vsel %vm233, %v727, %v729
    %v732 = vsel %vm234, %v728, %v730
    %v733 = vtanh.pop %v731
    %v734 = vtanh.pop %v732
    %v735 = vadd.f32 %v733, 1.0
    %v736 = vadd.f32 %v734, 1.0
    %v737 = vmul.f32 %v735, 0.5
    %v738 = vmul.f32 %v736, 0.5
    %v739 = vsel %vm233, %v733, %v737
    %v740 = vsel %vm234, %v734, %v738
    %v742 = vrot.slane %v673, 6
    %v744 = vmul.f32 %v739, %v742
    %v745 = vmul.f32 %v739, %v740
    %747 = vrot.lane.b32.xlu0 %v745, 64
    %v748 = vpop.permute.xlu0 %747
    %v750 = vadd.f32 %v744, %v748
    %v751 = vtanh.pop %v750
    %v752 = vmul.f32 %v740, %v751
    %v754 = vrot.slane %v752, 2
    %755 = vrot.lane.b32.xlu0 %v754, 64
    %v756 = vpop.permute.xlu0 %755
    %v757 = vsel %vm84, %v756, 0
    %759 = vmatpush.msra.mxu0 0.0
    %760 = vmatpush.msra.mxu0 0.0
    %761 = vmatpush.msra.mxu0 0.0
    %762 = vmatpush.msra.mxu0 0.0
    %763 = vmatpush.msra.mxu0 0.0
    %764 = vmatpush.msra.mxu0 0.0
    %765 = vmatpush.msra.mxu0 0.0
    %766 = vmatpush.msra.mxu0 0.0
    %767 = vmatpush.msra.mxu0 %v303
    %768 = vmatpush.msra.mxu0 %v301
    %769 = vmatpush.msra.mxu0 %v299
    %770 = vmatpush.msra.mxu0 %v297
    %771 = vmatpush.msra.mxu0 %v295
    %772 = vmatpush.msra.mxu0 %v293
    %773 = vmatpush.msra.mxu0 %v291
    %774 = vmatpush.msra.mxu0 %v289
    %775 = vmatmul.f32.gmra.mxu0 %v757
    %v776 = vpop.f32.mrf.mxu0
    %v777 = vadd.f32 0.0, %v776
    %778 = vdwg.mxu0
    %779 = vmatpush.msra.mxu0 0.0
    %780 = vmatpush.msra.mxu0 0.0
    %781 = vmatpush.msra.mxu0 0.0
    %782 = vmatpush.msra.mxu0 0.0
    %783 = vmatpush.msra.mxu0 0.0
    %784 = vmatpush.msra.mxu0 0.0
    %785 = vmatpush.msra.mxu0 0.0
    %786 = vmatpush.msra.mxu0 0.0
    %787 = vmatpush.msra.mxu0 %v304
    %788 = vmatpush.msra.mxu0 %v302
    %789 = vmatpush.msra.mxu0 %v300
    %790 = vmatpush.msra.mxu0 %v298
    %791 = vmatpush.msra.mxu0 %v296
    %792 = vmatpush.msra.mxu0 %v294
    %793 = vmatpush.msra.mxu0 %v292
    %794 = vmatpush.msra.mxu0 %v290
    %795 = vmatmul.f32.gmra.mxu0 %v757
    %v796 = vpop.f32.mrf.mxu0
    %v797 = vadd.f32 0.0, %v796
    %798 = vdwg.mxu0
    %v801 = vrot.slane %v777, 4
    %v802 = vrot.slane %v797, 4
    %v805 = vadd.f32 %v281, %v801
    %v806 = vadd.f32 %v282, %v802
    %v807 = vmul.f32 %v805, 0.5
    %v808 = vmul.f32 %v806, 0.5
    %v809 = vsel %vm233, %v805, %v807
    %v810 = vsel %vm234, %v806, %v808
    %v811 = vtanh.pop %v809
    %v812 = vtanh.pop %v810
    %v813 = vadd.f32 %v811, 1.0
    %v814 = vadd.f32 %v812, 1.0
    %v815 = vmul.f32 %v813, 0.5
    %v816 = vmul.f32 %v814, 0.5
    %v817 = vsel %vm233, %v811, %v815
    %v818 = vsel %vm234, %v812, %v816
    %v820 = vrot.slane %v750, 6
    %v822 = vmul.f32 %v817, %v820
    %v823 = vmul.f32 %v817, %v818
    %825 = vrot.lane.b32.xlu0 %v823, 64
    %v826 = vpop.permute.xlu0 %825
    %v828 = vadd.f32 %v822, %v826
    %v829 = vtanh.pop %v828
    %v830 = vmul.f32 %v818, %v829
    %v832 = vrot.slane %v830, 4
    %833 = vrot.lane.b32.xlu0 %v832, 64
    %v834 = vpop.permute.xlu0 %833
    %v835 = vsel %vm84, %v834, 0
    %837 = vmatpush.msra.mxu0 0.0
    %838 = vmatpush.msra.mxu0 0.0
    %839 = vmatpush.msra.mxu0 0.0
    %840 = vmatpush.msra.mxu0 0.0
    %841 = vmatpush.msra.mxu0 0.0
    %842 = vmatpush.msra.mxu0 0.0
    %843 = vmatpush.msra.mxu0 0.0
    %844 = vmatpush.msra.mxu0 0.0
    %845 = vmatpush.msra.mxu0 %v303
    %846 = vmatpush.msra.mxu0 %v301
    %847 = vmatpush.msra.mxu0 %v299
    %848 = vmatpush.msra.mxu0 %v297
    %849 = vmatpush.msra.mxu0 %v295
    %850 = vmatpush.msra.mxu0 %v293
    %851 = vmatpush.msra.mxu0 %v291
    %852 = vmatpush.msra.mxu0 %v289
    %853 = vmatmul.f32.gmra.mxu0 %v835
    %v854 = vpop.f32.mrf.mxu0
    %v855 = vadd.f32 0.0, %v854
    %856 = vdwg.mxu0
    %857 = vmatpush.msra.mxu0 0.0
    %858 = vmatpush.msra.mxu0 0.0
    %859 = vmatpush.msra.mxu0 0.0
    %860 = vmatpush.msra.mxu0 0.0
    %861 = vmatpush.msra.mxu0 0.0
    %862 = vmatpush.msra.mxu0 0.0
    %863 = vmatpush.msra.mxu0 0.0
    %864 = vmatpush.msra.mxu0 0.0
    %865 = vmatpush.msra.mxu0 %v304
    %866 = vmatpush.msra.mxu0 %v302
    %867 = vmatpush.msra.mxu0 %v300
    %868 = vmatpush.msra.mxu0 %v298
    %869 = vmatpush.msra.mxu0 %v296
    %870 = vmatpush.msra.mxu0 %v294
    %871 = vmatpush.msra.mxu0 %v292
    %872 = vmatpush.msra.mxu0 %v290
    %873 = vmatmul.f32.gmra.mxu0 %v835
    %v874 = vpop.f32.mrf.mxu0
    %v875 = vadd.f32 0.0, %v874
    %876 = vdwg.mxu0
    %v879 = vrot.slane %v855, 2
    %v880 = vrot.slane %v875, 2
    %v883 = vadd.f32 %v287, %v879
    %v884 = vadd.f32 %v288, %v880
    %v885 = vmul.f32 %v883, 0.5
    %v886 = vmul.f32 %v884, 0.5
    %v887 = vsel %vm233, %v883, %v885
    %v888 = vsel %vm234, %v884, %v886
    %v889 = vtanh.pop %v887
    %v890 = vtanh.pop %v888
    %v891 = vadd.f32 %v889, 1.0
    %v892 = vadd.f32 %v890, 1.0
    %v893 = vmul.f32 %v891, 0.5
    %v894 = vmul.f32 %v892, 0.5
    %v895 = vsel %vm233, %v889, %v893
    %v896 = vsel %vm234, %v890, %v894
    %v898 = vrot.slane %v828, 6
    %v900 = vmul.f32 %v895, %v898
    %v901 = vmul.f32 %v895, %v896
    %903 = vrot.lane.b32.xlu0 %v901, 64
    %v904 = vpop.permute.xlu0 %903
    %v906 = vadd.f32 %v900, %v904
    %v907 = vtanh.pop %v906
    %v908 = vmul.f32 %v896, %v907
    %v909 = vld [vmem:[%s8] sm:$0x1]
    %v911 = vperm.slane %v909, 0
    %912 = vrot.lane.b32.xlu0 %v911, 64
    %v913 = vpop.permute.xlu0 %912
    %v915 = vmul.f32 %v908, %v913
    %917 = vrot.lane.b32.xlu0 %v915, 64
    %v918 = vpop.permute.xlu0 %917
    %vm920 = vcmask 523270
    %v921 = vsel %vm920, %v918, 0.0
    %922 = vadd.xlane.f32.xlu0 %v921
    %v923 = vpop.xlane.xlu0 %922
    %v924 = vld [vmem:[#allocation2] sm:$0x1]
    %v926 = vperm.slane %v924, 0
    %v928 = vadd.f32 %v923, %v926
    %930 = vset.pattern.permute.xlu0 0
    %931 = vperm.xlu0 %930, %v928
    %v932 = vpop.permute.xlu0 %931
    %934 = vst [vmem:[#allocation8 - $0x6] sm:$0xc0] %v932
    // Predicated region
    $region50: #{tpu_custom_call.1} parent=1 // pred_check
      _
    $region51: #{tpu_custom_call.1} parent=1 // pred_check_branch
      %936 = sbr.rel (0) target = $region53
    $region52: #{tpu_custom_call.1} parent=1 // pred_region
      %938 = vsyncadd [#allocation5], 0
      %s940 = sshll.u32 [#allocation8], 4
      %s941 = int_to_ptr.vmem [resolvable:$true] %s940
      %s942 = sshll.u32 %s10, 4
      %s943 = int_to_ptr.hbm [resolvable:$true] %s942
      %945 = dma.vmem_to_hbm [thread:$0]  %s941, 32, %s943, [#allocation5]
    $region53: #{tpu_custom_call.1} parent=1 // pred_fallthru
      _
    // Predicated region
    $region54: #{tpu_custom_call.1} parent=1 // pred_check
      _
    $region55: #{tpu_custom_call.1} parent=1 // pred_check_branch
      %947 = sbr.rel (0) target = $region57
    $region56: #{tpu_custom_call.1} parent=1 // pred_region
      %949 = dma.done [#allocation5], 32
    $region57: #{tpu_custom_call.1} parent=1 // pred_fallthru
      _
    %950 = vsyncpa [#allocation4], 1
    %951 = vsyncpa [#allocation7], 1
    %952 = vsyncpa [#allocation5], 1

</llo_original>
